<compile_context>
chip_gen: v5e
topology: v5e:2x2
jax: 0.10.0
libtpu: 0.0.40
codegen_flags: <defaults>
</compile_context>

<pallas_src>
import numpy as np

import jax
import jax.numpy as jnp
from jax import lax
from jax.experimental import pallas as pl
from jax.experimental.pallas import tpu as pltpu


def _round_up(x, m):
    return (x + m - 1) // m * m


# ------------------------------ Pallas kernel --------------------------------
def _conv_transpose_mm_kernel(x_ref, w_ref, b_ref, o_ref):
    """One M-tile of the im2col'd transposed conv.

    x_ref: (K_pad, TM)        im2col patches, output pixels on lanes
    w_ref: (Cout_pad, K_pad)  flipped, tap-major weight matrix (resident)
    b_ref: (Cout_pad, 1)      bias column (zeros if no bias)
    o_ref: (Cout_pad, TM)     lane-dense output tile
    Single MXU matmul, accumulate in registers, store exactly once.
    """
    acc = jnp.dot(w_ref[...], x_ref[...], preferred_element_type=jnp.float32)
    o_ref[...] = (acc + b_ref[...]).astype(o_ref.dtype)


# --------------------------------- wrapper ------------------------------------
def conv_transpose2d_pallas(x, weight, bias, stride, padding, output_padding,
                            dilation, groups=1):
    """F.conv_transpose2d forward. x: (N, Cin, H, W), weight: (Cin, Cout, KH, KW)."""
    # TODO(synk): groups > 1 not implemented (needs block-diagonal weight matrix).
    assert groups == 1, "groups > 1 not supported by this kernel"
    # TODO(synk): output_size -> output_padding inference (_output_padding) is not
    # implemented; output_padding is taken directly (output_size=None path).
    N, Cin, H, W = x.shape
    Cin_w, Cout, KH, KW = weight.shape
    assert Cin_w == Cin
    sh, sw = stride
    ph, pw = padding
    oph, opw = output_padding
    dh, dw = dilation

    Hout = (H - 1) * sh - 2 * ph + dh * (KH - 1) + oph + 1
    Wout = (W - 1) * sw - 2 * pw + dw * (KW - 1) + opw + 1

    # Equivalent-forward-conv padding of the stride-dilated input.  Negative
    # edge pads (padding > dilation*(K-1)) crop the interior-dilated array.
    pad_h_lo = dh * (KH - 1) - ph
    pad_h_hi = dh * (KH - 1) - ph + oph
    pad_w_lo = dw * (KW - 1) - pw
    pad_w_hi = dw * (KW - 1) - pw + opw

    x_cm = jnp.transpose(x, (1, 0, 2, 3)).astype(jnp.float32)       # (Cin, N, H, W)
    x_pad = lax.pad(x_cm, jnp.array(0, jnp.float32),
                    ((0, 0, 0), (0, 0, 0),
                     (pad_h_lo, pad_h_hi, sh - 1),
                     (pad_w_lo, pad_w_hi, sw - 1)))
    Hp, Wp = x_pad.shape[2], x_pad.shape[3]
    assert Hp == Hout + dh * (KH - 1) and Wp == Wout + dw * (KW - 1)

    # im2col: fold all KH*KW taps into the contraction dim so the kernel does a
    # single MXU matmul (K = KH*KW*Cin) per tile instead of KH*KW tiny K=Cin ones.
    # TODO(synk): for stride > 1 a sub-pixel (phase) decomposition would avoid
    # gathering the zero-inserted rows/cols (~sh*sw fewer MACs / DMA bytes).
    taps = []
    for kh in range(KH):
        for kw in range(KW):
            taps.append(x_pad[:, :, kh * dh:kh * dh + Hout, kw * dw:kw * dw + Wout])
    # (KH*KW, Cin, N, Hout, Wout) -> (K, M): output pixels on the minor (lane) axis.
    K = KH * KW * Cin
    M = N * Hout * Wout
    x_col = jnp.stack(taps, axis=0).reshape(K, M)

    K_pad = _round_up(K, 8)
    Cout_pad = _round_up(Cout, 8)

    # Tile the pixel axis: bounds per-step VMEM, gives the auto-pipeline many
    # steps, and provides >=2 parallel blocks for megacore even at batch 1.
    TM = 512
    while TM > 128 and M <= TM:
        TM //= 2
    M_pad = _round_up(M, TM)

    x_col = jnp.pad(x_col, ((0, K_pad - K), (0, M_pad - M)))

    # Weight: flip spatially; tap-major / cin-minor contraction ordering so it
    # matches x_col's K axis; transposed so Cout sits on sublanes of the output.
    # TODO(synk): on v6e/v7x a bf16 x/w (with f32 accumulation) would roughly
    # halve DMA bytes and use the fast MXU path; kept f32 here for exactness.
    w_flip = jnp.flip(weight, axis=(2, 3)).astype(jnp.float32)
    w_mat = jnp.transpose(w_flip, (2, 3, 0, 1)).reshape(K, Cout)      # (K, Cout)
    w_mat_t = jnp.pad(w_mat.T, ((0, Cout_pad - Cout), (0, K_pad - K)))  # (Cout_pad, K_pad)

    if bias is None:
        b_col = jnp.zeros((Cout_pad, 1), jnp.float32)
    else:
        b_col = jnp.pad(bias.astype(jnp.float32).reshape(Cout, 1),
                        ((0, Cout_pad - Cout), (0, 0)))

    out = pl.pallas_call(
        _conv_transpose_mm_kernel,
        out_shape=jax.ShapeDtypeStruct((Cout_pad, M_pad), jnp.float32),
        grid=(M_pad // TM,),
        in_specs=[
            pl.BlockSpec((K_pad, TM), lambda m: (0, m)),
            pl.BlockSpec((Cout_pad, K_pad), lambda m: (0, 0)),
            pl.BlockSpec((Cout_pad, 1), lambda m: (0, 0)),
        ],
        out_specs=pl.BlockSpec((Cout_pad, TM), lambda m: (0, m)),
        compiler_params=pltpu.CompilerParams(
            dimension_semantics=("parallel",),
            vmem_limit_bytes=32 * 1024 * 1024),
    )(x_col, w_mat_t, b_col)

    y = out[:Cout, :M].reshape(Cout, N, Hout, Wout)
    return jnp.transpose(y, (1, 0, 2, 3)).astype(x.dtype)


# ----------------------------- numpy reference --------------------------------
def ref_conv_transpose2d(x, w, b, stride, padding, output_padding, dilation):
    x = np.asarray(x, np.float32)
    w = np.asarray(w, np.float32)
    N, Cin, H, W = x.shape
    _, Cout, KH, KW = w.shape
    sh, sw = stride
    ph, pw = padding
    oph, opw = output_padding
    dh, dw = dilation
    Hout = (H - 1) * sh - 2 * ph + dh * (KH - 1) + oph + 1
    Wout = (W - 1) * sw - 2 * pw + dw * (KW - 1) + opw + 1
    Hbig = (H - 1) * sh + dh * (KH - 1) + 1 + oph
    Wbig = (W - 1) * sw + dw * (KW - 1) + 1 + opw
    y = np.zeros((N, Cout, Hbig, Wbig), np.float32)
    for kh in range(KH):
        for kw in range(KW):
            contrib = np.einsum('nchw,cd->ndhw', x, w[:, :, kh, kw])
            y[:, :,
              kh * dh: kh * dh + (H - 1) * sh + 1: sh,
              kw * dw: kw * dw + (W - 1) * sw + 1: sw] += contrib
    y = y[:, :, ph:ph + Hout, pw:pw + Wout]
    if b is not None:
        y = y + np.asarray(b, np.float32).reshape(1, Cout, 1, 1)
    return y


# ----------------------------------- main --------------------------------------
if __name__ == "__main__":
    key = jax.random.PRNGKey(0)
    ks = jax.random.split(key, 9)
    KH = KW = 3

    # Config 1: typical upsampling transposed conv (stride 2), with bias.
    N, Cin, Cout, H, W = 2, 8, 16, 16, 16
    stride, padding, out_pad, dilation = (2, 2), (1, 1), (1, 1), (1, 1)
    bound = 1.0 / np.sqrt(Cin * KH * KW)
    x = jax.random.normal(ks[0], (N, Cin, H, W), jnp.float32)
    weight = jax.random.uniform(ks[1], (Cin, Cout, KH, KW), jnp.float32, -bound, bound)
    bias = jax.random.uniform(ks[2], (Cout,), jnp.float32, -bound, bound)

    y = conv_transpose2d_pallas(x, weight, bias, stride, padding, out_pad, dilation)
    jax.block_until_ready(y)
    y_ref = ref_conv_transpose2d(x, weight, bias, stride, padding, out_pad, dilation)
    np.testing.assert_allclose(np.asarray(y), y_ref, rtol=1e-4, atol=1e-4)

    # Config 2: asymmetric stride/padding + dilation, batch 1, no bias.
    N2, Cin2, Cout2, H2, W2 = 1, 4, 8, 9, 9
    stride2, padding2, out_pad2, dilation2 = (1, 2), (2, 0), (0, 1), (2, 1)
    x2 = jax.random.normal(ks[3], (N2, Cin2, H2, W2), jnp.float32)
    bound2 = 1.0 / np.sqrt(Cin2 * KH * KW)
    weight2 = jax.random.uniform(ks[4], (Cin2, Cout2, KH, KW), jnp.float32, -bound2, bound2)

    y2 = conv_transpose2d_pallas(x2, weight2, None, stride2, padding2, out_pad2, dilation2)
    jax.block_until_ready(y2)
    y2_ref = ref_conv_transpose2d(x2, weight2, None, stride2, padding2, out_pad2, dilation2)
    np.testing.assert_allclose(np.asarray(y2), y2_ref, rtol=1e-4, atol=1e-4)

    # Config 3: padding > dilation*(K-1)  ->  exercises the negative-edge-pad path.
    N3, Cin3, Cout3, H3, W3 = 1, 4, 8, 10, 10
    stride3, padding3, out_pad3, dilation3 = (2, 2), (3, 3), (1, 1), (1, 1)
    x3 = jax.random.normal(ks[5], (N3, Cin3, H3, W3), jnp.float32)
    bound3 = 1.0 / np.sqrt(Cin3 * KH * KW)
    weight3 = jax.random.uniform(ks[6], (Cin3, Cout3, KH, KW), jnp.float32, -bound3, bound3)
    bias3 = jax.random.uniform(ks[7], (Cout3,), jnp.float32, -bound3, bound3)

    y3 = conv_transpose2d_pallas(x3, weight3, bias3, stride3, padding3, out_pad3, dilation3)
    jax.block_until_ready(y3)
    y3_ref = ref_conv_transpose2d(x3, weight3, bias3, stride3, padding3, out_pad3, dilation3)
    np.testing.assert_allclose(np.asarray(y3), y3_ref, rtol=1e-4, atol=1e-4)

    print("KERNEL_OK")
</pallas_src>

<mosaic_0001>
module attributes {stable_mosaic.version = 11 : i64} {
  func.func @_conv_transpose_mm_kernel(%arg0: i32, %arg1: memref<72x512xf32, #tpu.memory_space<vmem>>, %arg2: memref<16x72xf32, #tpu.memory_space<vmem>>, %arg3: memref<16x1xf32, #tpu.memory_space<vmem>>, %arg4: memref<16x512xf32, #tpu.memory_space<vmem>>) attributes {dimension_semantics = [#tpu.dimension_semantics<parallel>], iteration_bounds = array<i64: 4>, scalar_prefetch = 0 : i64, scratch_operands = 0 : i64, tpu.core_type = #tpu.core_type<tc>, window_params = [{transform_indices = @transform_0, window_bounds = array<i64: 72, 512>}, {pipeline_mode = #tpu.pipeline_mode<synchronous>, transform_indices = @transform_1, window_bounds = array<i64: 16, 72>}, {pipeline_mode = #tpu.pipeline_mode<synchronous>, transform_indices = @transform_2, window_bounds = array<i64: 16, 1>}, {transform_indices = @transform_3, window_bounds = array<i64: 16, 512>}]} {
    %c0 = arith.constant 0 : index
    %c0_0 = arith.constant 0 : index
    %0 = vector.load %arg2[%c0, %c0_0] : memref<16x72xf32, #tpu.memory_space<vmem>>, vector<16x72xf32>
    %c0_1 = arith.constant 0 : index
    %c0_2 = arith.constant 0 : index
    %1 = vector.load %arg1[%c0_1, %c0_2] : memref<72x512xf32, #tpu.memory_space<vmem>>, vector<72x512xf32>
    %cst = arith.constant dense<0.000000e+00> : vector<16x512xf32>
    %2 = tpu.matmul %0, %1, %cst {dimension_numbers = #tpu.dot_dimension_numbers<[1], [0], [0], [1], [0, 0, 1, 1], [], []>} : vector<16x72xf32>, vector<72x512xf32>, vector<16x512xf32> -> vector<16x512xf32>
    %c0_3 = arith.constant 0 : index
    %c0_4 = arith.constant 0 : index
    %3 = vector.load %arg3[%c0_3, %c0_4] : memref<16x1xf32, #tpu.memory_space<vmem>>, vector<16x1xf32>
    %4 = vector.broadcast %3 : vector<16x1xf32> to vector<16x512xf32>
    %5 = arith.addf %2, %4 : vector<16x512xf32>
    %c0_5 = arith.constant 0 : index
    %c0_6 = arith.constant 0 : index
    %6 = vector.load %arg4[%c0_5, %c0_6] : memref<16x512xf32, #tpu.memory_space<vmem>>, vector<16x512xf32>
    tpu.vector_store %arg4[%c0_5, %c0_6], %5 {strides = array<i32>} : memref<16x512xf32, #tpu.memory_space<vmem>>, vector<16x512xf32>,
    return
  }
  func.func @transform_0(%arg0: i32) -> (i32, i32) {
    %c0_i32 = arith.constant 0 : i32
    %c0_i32_0 = arith.constant 0 : i32
    return %c0_i32, %arg0 : i32, i32
  }
  func.func @transform_1(%arg0: i32) -> (i32, i32) {
    %c0_i32 = arith.constant 0 : i32
    %c0_i32_0 = arith.constant 0 : i32
    %c0_i32_1 = arith.constant 0 : i32
    return %c0_i32, %c0_i32_0 : i32, i32
  }
  func.func @transform_2(%arg0: i32) -> (i32, i32) {
    %c0_i32 = arith.constant 0 : i32
    %c0_i32_0 = arith.constant 0 : i32
    %c0_i32_1 = arith.constant 0 : i32
    return %c0_i32, %c0_i32_0 : i32, i32
  }
  func.func @transform_3(%arg0: i32) -> (i32, i32) {
    %c0_i32 = arith.constant 0 : i32
    %c0_i32_0 = arith.constant 0 : i32
    return %c0_i32, %arg0 : i32, i32
  }
}

</mosaic_0001>

<llo_original>
// kernel: tpu_custom_call.1
$region0: #{tpu_custom_call.1}
  #allocation0 [shape = 'u32[]', space=smem, size = 0x4, offset = 0x4, fixed_abs, tag = 'smem constant byte address 0x4 - core index']
  #allocation1 [shape = 'u32[72,128]{1,0:T(1,128)}', space=vmem, size = 0x9000, scoped, tag = 'internal scratch']
  %s0 = inlined_call_operand.hbm [shape: f32[72,2048], index: 0, kind: input, shape index: {}]
  %s1 = inlined_call_operand.vmem [shape: f32[16,72], index: 1, kind: input, shape index: {}]
  %s2 = inlined_call_operand.vmem [shape: f32[16,1], index: 2, kind: input, shape index: {}]
  %s3 = inlined_call_operand.hbm [shape: f32[16,2048], index: 3, kind: output, shape index: {}]
  %s4 = sld [smem:[#allocation0]]
  $region49: #{tpu_custom_call.1} parent=0
    _
  %s6 = ssub.s32 1, %s4
  %s7 = scalar_select 0, %s6, %s4
  $region1: #{tpu_custom_call.1} parent=0
    #allocation2 [shape = 'u8[294912]{0}', space=vmem, size = 0x48000, scoped, tag = 'input window, operand 0']
    #allocation3 [shape = 's32[2]{0}', space=sflag, size = 0x8, scoped, tag = 'scoped memory for tpu_custom_call.1']
    #allocation4 [shape = 's32[2]{0}', space=sflag, size = 0x8, scoped, tag = 'scoped memory for tpu_custom_call.1']
    #allocation5 [shape = 'u8[65536]{0}', space=vmem, size = 0x10000, scoped, tag = 'output window, operand 0']
    %8 = vsyncpa [#allocation3], 0
    %s9 = scalar_lea.sflag [#allocation3], 1
    %10 = vsyncpa %s9, 0
    %11 = vsyncpa [#allocation4], 0
    %s12 = scalar_lea.sflag [#allocation4], 1
    %13 = vsyncpa %s12, 0
    loop: start=0, step=1, limit=6
    $region2: #{tpu_custom_call.1} parent=1 // loop_pre_header
      _
    $region3: #{tpu_custom_call.1} parent=1 // loop_header
      %s15 = sphi 0, %s19
      %p16 = scmp.ge.s32.totalorder %s15, 6
      %s25 = sphi 0, %s27
      %s28 = sphi 0, %s25
      %s29 = sphi 0, %s28
      %s45 = sphi 0, %s29
      %s49 = sphi 0, %s49
      %s51 = sphi 0, %s49
      %s52 = sphi 0, %s51
      %s66 = sphi 0, %s52
      %s70 = sphi 0, %s70
      %s72 = sphi 0, %s70
      %s73 = sphi 0, %s72
      %s87 = sphi 0, %s73
      %s93 = sphi 0, %s95
      %s96 = sphi 0, %s93
      %s97 = sphi 0, %s96
      %s113 = sphi 0, %s97
    $region4: #{tpu_custom_call.1} parent=1 // loop_header_branch
      %18 = sbr.rel (%p16) target = $region8
    $region5: #{tpu_custom_call.1} parent=1 // loop_body
      %s20 = ssub.s32 %s15, 1
      %s21 = ssub.s32 %s15, 2
      %s22 = sadd.s32 %s15, 1
      %s23 = ssub.s32 %s15, %s22
      %p24 = scmp.eq.s32.totalorder %s23, 0
      %s26 = sadd.s32 %s25, 1
      %s27 = scalar_select %p24, %s25, %s26
      %p30 = pneg %p24
      %p31 = scmp.eq.s32.totalorder %s15, 3
      %p32 = por %p30, %p31
      %p33 = scmp.ne.s32.totalorder %s25, %s28
      %p34 = scmp.eq.s32.totalorder %s15, 0
      %p35 = por %p33, %p34
      %p36 = scmp.ne.s32.totalorder %s25, %s28
      %p37 = scmp.eq.s32.totalorder %s20, 3
      %p38 = por %p36, %p37
      %p39 = scmp.ne.s32.totalorder %s28, %s29
      %p40 = scmp.eq.s32.totalorder %s20, 0
      %p41 = por %p39, %p40
      %p42 = scmp.ne.s32.totalorder %s28, %s29
      %p43 = scmp.eq.s32.totalorder %s21, 3
      %p44 = por %p42, %p43
      %p46 = scmp.ne.s32.totalorder %s29, %s45
      %p47 = scmp.eq.s32.totalorder %s21, 0
      %p48 = por %p46, %p47
      %s50 = sadd.s32 %s49, 1
      %p53 = scmp.eq.s32.totalorder %s15, 3
      %p54 = scmp.ne.s32.totalorder %s49, %s51
      %p55 = scmp.eq.s32.totalorder %s15, 0
      %p56 = por %p54, %p55
      %p57 = scmp.ne.s32.totalorder %s49, %s51
      %p58 = scmp.eq.s32.totalorder %s20, 3
      %p59 = por %p57, %p58
      %p60 = scmp.ne.s32.totalorder %s51, %s52
      %p61 = scmp.eq.s32.totalorder %s20, 0
      %p62 = por %p60, %p61
      %p63 = scmp.ne.s32.totalorder %s51, %s52
      %p64 = scmp.eq.s32.totalorder %s21, 3
      %p65 = por %p63, %p64
      %p67 = scmp.ne.s32.totalorder %s52, %s66
      %p68 = scmp.eq.s32.totalorder %s21, 0
      %p69 = por %p67, %p68
      %s71 = sadd.s32 %s70, 1
      %p74 = scmp.eq.s32.totalorder %s15, 3
      %p75 = scmp.ne.s32.totalorder %s70, %s72
      %p76 = scmp.eq.s32.totalorder %s15, 0
      %p77 = por %p75, %p76
      %p78 = scmp.ne.s32.totalorder %s70, %s72
      %p79 = scmp.eq.s32.totalorder %s20, 3
      %p80 = por %p78, %p79
      %p81 = scmp.ne.s32.totalorder %s72, %s73
      %p82 = scmp.eq.s32.totalorder %s20, 0
      %p83 = por %p81, %p82
      %p84 = scmp.ne.s32.totalorder %s72, %s73
      %p85 = scmp.eq.s32.totalorder %s21, 3
      %p86 = por %p84, %p85
      %p88 = scmp.ne.s32.totalorder %s73, %s87
      %p89 = scmp.eq.s32.totalorder %s21, 0
      %p90 = por %p88, %p89
      %s91 = ssub.s32 %s15, %s22
      %p92 = scmp.eq.s32.totalorder %s91, 0
      %s94 = sadd.s32 %s93, 1
      %s95 = scalar_select %p92, %s93, %s94
      %p98 = pneg %p92
      %p99 = scmp.eq.s32.totalorder %s15, 3
      %p100 = por %p98, %p99
      %p101 = scmp.ne.s32.totalorder %s93, %s96
      %p102 = scmp.eq.s32.totalorder %s15, 0
      %p103 = por %p101, %p102
      %p104 = scmp.ne.s32.totalorder %s93, %s96
      %p105 = scmp.eq.s32.totalorder %s20, 3
      %p106 = por %p104, %p105
      %p107 = scmp.ne.s32.totalorder %s96, %s97
      %p108 = scmp.eq.s32.totalorder %s20, 0
      %p109 = por %p107, %p108
      %p110 = scmp.ne.s32.totalorder %s96, %s97
      %p111 = scmp.eq.s32.totalorder %s21, 3
      %p112 = por %p110, %p111
      %p114 = scmp.ne.s32.totalorder %s97, %s113
      %p115 = scmp.eq.s32.totalorder %s21, 0
      %p116 = por %p114, %p115
      %p117 = scmp.le.s32.totalorder 1, %s15
      %p118 = scmp.lt.s32.totalorder %s15, 5
      %p119 = pnand %p117, %p118
      %p120 = pneg %p119
      // Predicated region
      $region9: #{tpu_custom_call.1} parent=5 // pred_check
        _
      $region10: #{tpu_custom_call.1} parent=5 // pred_check_branch
        %122 = sbr.rel (%p119) target = $region12
      $region11: #{tpu_custom_call.1} parent=5 // pred_region
        %s123 = ssub.s32 %s15, 1
        // Predicated region
        $region13: #{tpu_custom_call.1} parent=11 // pred_check
          %p124 = pneg %p62
        $region14: #{tpu_custom_call.1} parent=11 // pred_check_branch
          %126 = sbr.rel (%p124) target = $region16
        $region15: #{tpu_custom_call.1} parent=11 // pred_region
          _
        $region16: #{tpu_custom_call.1} parent=11 // pred_fallthru
          _
        // Predicated region
        $region17: #{tpu_custom_call.1} parent=11 // pred_check
          %p127 = pneg %p83
        $region18: #{tpu_custom_call.1} parent=11 // pred_check_branch
          %129 = sbr.rel (%p127) target = $region20
        $region19: #{tpu_custom_call.1} parent=11 // pred_region
          _
        $region20: #{tpu_custom_call.1} parent=11 // pred_fallthru
          _
      $region12: #{tpu_custom_call.1} parent=5 // pred_fallthru
        _
      %p130 = scmp.lt.s32.totalorder %s15, 4
      // Predicated region
      $region21: #{tpu_custom_call.1} parent=5 // pred_check
        %p131 = pneg %p130
      $region22: #{tpu_custom_call.1} parent=5 // pred_check_branch
        %133 = sbr.rel (%p131) target = $region24
      $region23: #{tpu_custom_call.1} parent=5 // pred_region
        // Predicated region
        $region25: #{tpu_custom_call.1} parent=23 // pred_check
          %p134 = pneg %p35
        $region26: #{tpu_custom_call.1} parent=23 // pred_check_branch
          %136 = sbr.rel (%p134) target = $region28
        $region27: #{tpu_custom_call.1} parent=23 // pred_region
          %s137 = sand.u32 %s25, 1
          %s138 = scalar_lea.sflag [#allocation3], %s137
          %s139 = sand.u32 %s25, 1
          %s140 = smul.addr %s139, 288
          %s141 = scalar_lea.vmem [#allocation2], %s140
          %s142 = smul.u32 4, %s15
          %144 = vsyncadd %s138, 0
          %s145 = smul.addr %s142, 8
          %s146 = scalar_lea.hbm %s0, %s145
          %s147 = sshll.u32 %s146, 4
          %s148 = int_to_ptr.hbm [resolvable:$true] %s147
          %s149 = sshll.u32 %s141, 4
          %s150 = int_to_ptr.vmem [resolvable:$true] %s149
          %155 = dma.hbm_to_vmem [thread:$0]  %s148, 4608, %s150, %s138, 2048, 512, 32
        $region28: #{tpu_custom_call.1} parent=23 // pred_fallthru
          _
      $region24: #{tpu_custom_call.1} parent=5 // pred_fallthru
        _
      %p156 = scmp.le.s32.totalorder 1, %s15
      %p157 = scmp.lt.s32.totalorder %s15, 5
      %p158 = pnand %p156, %p157
      %p159 = pneg %p158
      // Predicated region
      $region29: #{tpu_custom_call.1} parent=5 // pred_check
        _
      $region30: #{tpu_custom_call.1} parent=5 // pred_check_branch
        %161 = sbr.rel (%p158) target = $region32
      $region31: #{tpu_custom_call.1} parent=5 // pred_region
        %s162 = ssub.s32 %s15, 1
        %s163 = sand.u32 %s28, 1
        %s164 = scalar_lea.sflag [#allocation3], %s163
        %s165 = sand.u32 %s28, 1
        %s166 = smul.addr %s165, 288
        %s167 = scalar_lea.vmem [#allocation2], %s166
        // Predicated region
        $region33: #{tpu_custom_call.1} parent=31 // pred_check
          %p168 = pneg %p41
        $region34: #{tpu_custom_call.1} parent=31 // pred_check_branch
          %170 = sbr.rel (%p168) target = $region36
        $region35: #{tpu_custom_call.1} parent=31 // pred_region
          %172 = dma.done %s164, 4608
        $region36: #{tpu_custom_call.1} parent=31 // pred_fallthru
          _
        %s173 = sand.u32 %s28, 1
        %s174 = scalar_lea.sflag [#allocation3], %s173
        %s175 = sand.u32 %s28, 1
        %s176 = smul.addr %s175, 288
        %s177 = scalar_lea.vmem [#allocation2], %s176
        %p178 = pneg %p41
        %p179 = pneg %p38
        %p180 = pneg %p62
        %p181 = pneg %p59
        %p182 = pneg %p83
        %p183 = pneg %p80
        %p184 = pneg %p109
        %p185 = pneg %p106
        %s186 = sand.u32 %s96, 1
        %s187 = scalar_lea.sflag [#allocation4], %s186
        %s188 = sand.u32 %s96, 1
        %s189 = smul.addr %s188, 64
        %s190 = scalar_lea.vmem [#allocation5], %s189
        %s191 = smul.u32 4, %s20
        %s192 = smul.u32 4, %s20
        %v193 = vld [vmem:[%s1] sm:$0xff]
        %v194 = vld [vmem:[%s1 + $0x8] sm:$0xff]
        %v195 = vld [vmem:[%s167] sm:$0xff]
        %v196 = vld [vmem:[%s167 + $0x8] sm:$0xff]
        %v197 = vld [vmem:[%s167 + $0x10] sm:$0xff]
        %v198 = vld [vmem:[%s167 + $0x18] sm:$0xff]
        %v199 = vld [vmem:[%s167 + $0x20] sm:$0xff]
        %v200 = vld [vmem:[%s167 + $0x28] sm:$0xff]
        %v201 = vld [vmem:[%s167 + $0x30] sm:$0xff]
        %v202 = vld [vmem:[%s167 + $0x38] sm:$0xff]
        %v203 = vld [vmem:[%s167 + $0x40] sm:$0xff]
        %v204 = vld [vmem:[%s167 + $0x48] sm:$0xff]
        %v205 = vld [vmem:[%s167 + $0x50] sm:$0xff]
        %v206 = vld [vmem:[%s167 + $0x58] sm:$0xff]
        %v207 = vld [vmem:[%s167 + $0x60] sm:$0xff]
        %v208 = vld [vmem:[%s167 + $0x68] sm:$0xff]
        %v209 = vld [vmem:[%s167 + $0x70] sm:$0xff]
        %v210 = vld [vmem:[%s167 + $0x78] sm:$0xff]
        %v211 = vld [vmem:[%s167 + $0x80] sm:$0xff]
        %v212 = vld [vmem:[%s167 + $0x88] sm:$0xff]
        %v213 = vld [vmem:[%s167 + $0x90] sm:$0xff]
        %v214 = vld [vmem:[%s167 + $0x98] sm:$0xff]
        %v215 = vld [vmem:[%s167 + $0xa0] sm:$0xff]
        %v216 = vld [vmem:[%s167 + $0xa8] sm:$0xff]
        %v217 = vld [vmem:[%s167 + $0xb0] sm:$0xff]
        %v218 = vld [vmem:[%s167 + $0xb8] sm:$0xff]
        %v219 = vld [vmem:[%s167 + $0xc0] sm:$0xff]
        %v220 = vld [vmem:[%s167 + $0xc8] sm:$0xff]
        %v221 = vld [vmem:[%s167 + $0xd0] sm:$0xff]
        %v222 = vld [vmem:[%s167 + $0xd8] sm:$0xff]
        %v223 = vld [vmem:[%s167 + $0xe0] sm:$0xff]
        %v224 = vld [vmem:[%s167 + $0xe8] sm:$0xff]
        %v225 = vld [vmem:[%s167 + $0xf0] sm:$0xff]
        %v226 = vld [vmem:[%s167 + $0xf8] sm:$0xff]
        %v227 = vld [vmem:[%s167 + $0x100] sm:$0xff]
        %v228 = vld [vmem:[%s167 + $0x108] sm:$0xff]
        %v229 = vld [vmem:[%s167 + $0x110] sm:$0xff]
        %v230 = vld [vmem:[%s167 + $0x118] sm:$0xff]
        %v231 = vld [vmem:[%s2] sm:$0xff]
        %v232 = vld [vmem:[%s2 + $0x8] sm:$0xff]
        %234 = vset.pattern.permute.xlu0 0
        %235 = vperm.xlu0 %234, %v231
        %v236 = vpop.permute.xlu0 %235
        %239 = vset.pattern.permute.xlu0 0
        %240 = vperm.xlu0 %239, %v232
        %v241 = vpop.permute.xlu0 %240
        %vm243 = vcmask 588800
        %v245 = vsel %vm243, %v193, 0
        %v248 = vsel %vm243, %v194, 0
        %250 = vmatpush.msra.mxu0 0.0
        %251 = vmatpush.msra.mxu0 0.0
        %252 = vmatpush.msra.mxu0 0.0
        %253 = vmatpush.msra.mxu0 0.0
        %254 = vmatpush.msra.mxu0 0.0
        %255 = vmatpush.msra.mxu0 0.0
        %256 = vmatpush.msra.mxu0 0.0
        %257 = vmatpush.msra.mxu0 %v227
        %258 = vmatpush.msra.mxu0 %v223
        %259 = vmatpush.msra.mxu0 %v219
        %260 = vmatpush.msra.mxu0 %v215
        %261 = vmatpush.msra.mxu0 %v211
        %262 = vmatpush.msra.mxu0 %v207
        %263 = vmatpush.msra.mxu0 %v203
        %264 = vmatpush.msra.mxu0 %v199
        %265 = vmatpush.msra.mxu0 %v195
        %266 = vmatmul.f32.gmra.mxu0 %v245
        %v267 = vpop.f32.mrf.mxu0
        %v268 = vadd.f32 %v236, %v267
        %269 = vmatmul.f32.gmra.mxu0 %v248
        %v270 = vpop.f32.mrf.mxu0
        %v271 = vadd.f32 %v241, %v270
        %272 = vdwg.mxu0
        %273 = vmatpush.msra.mxu0 0.0
        %274 = vmatpush.msra.mxu0 0.0
        %275 = vmatpush.msra.mxu0 0.0
        %276 = vmatpush.msra.mxu0 0.0
        %277 = vmatpush.msra.mxu0 0.0
        %278 = vmatpush.msra.mxu0 0.0
        %279 = vmatpush.msra.mxu0 0.0
        %280 = vmatpush.msra.mxu0 %v228
        %281 = vmatpush.msra.mxu0 %v224
        %282 = vmatpush.msra.mxu0 %v220
        %283 = vmatpush.msra.mxu0 %v216
        %284 = vmatpush.msra.mxu0 %v212
        %285 = vmatpush.msra.mxu0 %v208
        %286 = vmatpush.msra.mxu0 %v204
        %287 = vmatpush.msra.mxu0 %v200
        %288 = vmatpush.msra.mxu0 %v196
        %289 = vmatmul.f32.gmra.mxu0 %v245
        %v290 = vpop.f32.mrf.mxu0
        %v291 = vadd.f32 %v236, %v290
        %292 = vmatmul.f32.gmra.mxu0 %v248
        %v293 = vpop.f32.mrf.mxu0
        %v294 = vadd.f32 %v241, %v293
        %295 = vdwg.mxu0
        %296 = vmatpush.msra.mxu0 0.0
        %297 = vmatpush.msra.mxu0 0.0
        %298 = vmatpush.msra.mxu0 0.0
        %299 = vmatpush.msra.mxu0 0.0
        %300 = vmatpush.msra.mxu0 0.0
        %301 = vmatpush.msra.mxu0 0.0
        %302 = vmatpush.msra.mxu0 0.0
        %303 = vmatpush.msra.mxu0 %v229
        %304 = vmatpush.msra.mxu0 %v225
        %305 = vmatpush.msra.mxu0 %v221
        %306 = vmatpush.msra.mxu0 %v217
        %307 = vmatpush.msra.mxu0 %v213
        %308 = vmatpush.msra.mxu0 %v209
        %309 = vmatpush.msra.mxu0 %v205
        %310 = vmatpush.msra.mxu0 %v201
        %311 = vmatpush.msra.mxu0 %v197
        %312 = vmatmul.f32.gmra.mxu0 %v245
        %v313 = vpop.f32.mrf.mxu0
        %v314 = vadd.f32 %v236, %v313
        %315 = vmatmul.f32.gmra.mxu0 %v248
        %v316 = vpop.f32.mrf.mxu0
        %v317 = vadd.f32 %v241, %v316
        %318 = vdwg.mxu0
        %319 = vmatpush.msra.mxu0 0.0
        %320 = vmatpush.msra.mxu0 0.0
        %321 = vmatpush.msra.mxu0 0.0
        %322 = vmatpush.msra.mxu0 0.0
        %323 = vmatpush.msra.mxu0 0.0
        %324 = vmatpush.msra.mxu0 0.0
        %325 = vmatpush.msra.mxu0 0.0
        %326 = vmatpush.msra.mxu0 %v230
        %327 = vmatpush.msra.mxu0 %v226
        %328 = vmatpush.msra.mxu0 %v222
        %329 = vmatpush.msra.mxu0 %v218
        %330 = vmatpush.msra.mxu0 %v214
        %331 = vmatpush.msra.mxu0 %v210
        %332 = vmatpush.msra.mxu0 %v206
        %333 = vmatpush.msra.mxu0 %v202
        %334 = vmatpush.msra.mxu0 %v198
        %335 = vmatmul.f32.gmra.mxu0 %v245
        %v336 = vpop.f32.mrf.mxu0
        %v337 = vadd.f32 %v236, %v336
        %338 = vmatmul.f32.gmra.mxu0 %v248
        %v339 = vpop.f32.mrf.mxu0
        %v340 = vadd.f32 %v241, %v339
        %341 = vdwg.mxu0
        %342 = vst [vmem:[%s190] sm:$0xff] %v268
        %343 = vst [vmem:[%s190 + $0x8] sm:$0xff] %v291
        %344 = vst [vmem:[%s190 + $0x10] sm:$0xff] %v314
        %345 = vst [vmem:[%s190 + $0x18] sm:$0xff] %v337
        %346 = vst [vmem:[%s190 + $0x20] sm:$0xff] %v271
        %347 = vst [vmem:[%s190 + $0x28] sm:$0xff] %v294
        %348 = vst [vmem:[%s190 + $0x30] sm:$0xff] %v317
        %349 = vst [vmem:[%s190 + $0x38] sm:$0xff] %v340
        %s350 = sand.u32 %s96, 1
        %s351 = scalar_lea.sflag [#allocation4], %s350
        %s352 = sand.u32 %s96, 1
        %s353 = smul.addr %s352, 64
        %s354 = scalar_lea.vmem [#allocation5], %s353
        // Predicated region
        $region37: #{tpu_custom_call.1} parent=31 // pred_check
          %p355 = pneg %p106
        $region38: #{tpu_custom_call.1} parent=31 // pred_check_branch
          %357 = sbr.rel (%p355) target = $region40
        $region39: #{tpu_custom_call.1} parent=31 // pred_region
          %s358 = smul.u32 4, %s20
          %360 = vsyncadd %s351, 0
          %s361 = smul.addr %s358, 8
          %s362 = scalar_lea.hbm %s3, %s361
          %s363 = sshll.u32 %s354, 4
          %s364 = int_to_ptr.vmem [resolvable:$true] %s363
          %s365 = sshll.u32 %s362, 4
          %s366 = int_to_ptr.hbm [resolvable:$true] %s365
          %371 = dma.vmem_to_hbm [thread:$0]  %s364, 1024, %s366, %s351, 512, 2048, 32
        $region40: #{tpu_custom_call.1} parent=31 // pred_fallthru
          _
      $region32: #{tpu_custom_call.1} parent=5 // pred_fallthru
        _
      %p372 = scmp.le.s32.totalorder 2, %s15
      // Predicated region
      $region41: #{tpu_custom_call.1} parent=5 // pred_check
        %p373 = pneg %p372
      $region42: #{tpu_custom_call.1} parent=5 // pred_check_branch
        %375 = sbr.rel (%p373) target = $region44
      $region43: #{tpu_custom_call.1} parent=5 // pred_region
        %s376 = ssub.s32 %s15, 2
        // Predicated region
        $region45: #{tpu_custom_call.1} parent=43 // pred_check
          %p377 = pneg %p112
        $region46: #{tpu_custom_call.1} parent=43 // pred_check_branch
          %379 = sbr.rel (%p377) target = $region48
        $region47: #{tpu_custom_call.1} parent=43 // pred_region
          %s380 = sand.u32 %s97, 1
          %s381 = scalar_lea.sflag [#allocation4], %s380
          %s382 = sand.u32 %s97, 1
          %s383 = smul.addr %s382, 64
          %s384 = scalar_lea.vmem [#allocation5], %s383
          %386 = dma.done %s381, 1024
        $region48: #{tpu_custom_call.1} parent=43 // pred_fallthru
          _
      $region44: #{tpu_custom_call.1} parent=5 // pred_fallthru
        _
    $region6: #{tpu_custom_call.1} parent=1 // loop_footer
      %s19 = sadd.s32 1, %s15
    $region7: #{tpu_custom_call.1} parent=1 // loop_footer_branch
      %14 = sbr.rel target = $region3
    $region8: #{tpu_custom_call.1} parent=1 // loop_exit
      _
    %387 = vsyncpa [#allocation3], 1
    %s388 = scalar_lea.sflag [#allocation3], 1
    %389 = vsyncpa %s388, 1
    %390 = vsyncpa [#allocation4], 1
    %s391 = scalar_lea.sflag [#allocation4], 1
    %392 = vsyncpa %s391, 1

</llo_original>
